<compile_context>
chip_gen: v6e
topology: v6e:2x2x1
jax: 0.10.0
libtpu: 0.0.40
codegen_flags: <defaults>
</compile_context>

<pallas_src>
import functools
import re

import jax
import jax.numpy as jnp
from jax import lax
from jax.experimental import pallas as pl
from jax.experimental.pallas import tpu as pltpu


def _round_up(n, m):
    return ((n + m - 1) // m) * m


def _tpu_generation():
    """Best-effort TPU generation detection (0 if unknown)."""
    try:
        kind = (jax.devices()[0].device_kind or "").lower()
    except Exception:
        return 0
    m = re.search(r"(\d+)", kind)
    return int(m.group(1)) if m else 0


# ----------------------------------------------------------------------------
# Kernel: one grid step processes a (block_b, D) batch tile of raw inputs.
#   w1_ref: (P, D)  fused layer-1 weights  [W1a ; W1b] (transposed, bf16)
#   w2_ref: (P, P)  block-diag(W2a, W2b)   (transposed, bf16)
#   w3_ref: (8, P)  head: row0 = w3a, row1 = w3b (bf16)
#   b_ref : (3, P, 1) biases (f32); layer-3 biases live in rows 0/1 of slab 2.
# Hidden activations are (P, block_b): features on sublanes, batch on lanes.
# ----------------------------------------------------------------------------
def double_critic_kernel(x_ref, w1_ref, w2_ref, w3_ref, b_ref, o_ref, *, tanh_bf16):
    cdt = w1_ref.dtype                       # matmul operand dtype (bf16)
    x = x_ref[...].astype(cdt)               # (Bt, D); cast in VMEM, not in HBM

    # Layer 1: contract over features (last dim of both operands) -> (P, Bt).
    a = lax.dot_general(
        w1_ref[...], x,
        dimension_numbers=(((1,), (1,)), ((), ())),
        preferred_element_type=jnp.float32) + b_ref[0]
    h = jnp.tanh(a.astype(cdt)) if tanh_bf16 else jnp.tanh(a).astype(cdt)

    # Layer 2: block-diag(W2a, W2b): (P, P) x (P, Bt).
    a = jnp.dot(w2_ref[...], h, preferred_element_type=jnp.float32) + b_ref[1]
    h = jnp.tanh(a.astype(cdt)) if tanh_bf16 else jnp.tanh(a).astype(cdt)

    # Head: (8, P) x (P, Bt) -> (8, Bt); rows 0/1 are q1/q2.
    q = jnp.dot(w3_ref[...], h, preferred_element_type=jnp.float32)
    q = q + b_ref[2][0:8, :]

    # DoubleCritic.forward: min(q1, q2); lane-dense (1, Bt) store.
    o_ref[...] = jnp.minimum(q[0:1, :], q[1:2, :]).astype(o_ref.dtype)


# ----------------------------------------------------------------------------
# Parameter packing: two QFNets -> fused / block-diagonal padded slabs.
# Call this ONCE (after init / parameter update) and keep the result; the
# forward pass only consumes the packed representation.
# ----------------------------------------------------------------------------
def pack_double_critic_params(params1, params2, compute_dtype=jnp.bfloat16):
    w1a, b1a, w2a, b2a, w3a, b3a = params1
    w1b, b1b, w2b, b2b, w3b, b3b = params2
    D, H = w1a.shape
    H2 = 2 * H
    P = _round_up(H2, 128)          # full lane width -> unmasked loads / MXU tiles

    w1 = jnp.zeros((P, D), jnp.float32)
    w1 = w1.at[0:H, :].set(w1a.T)                 # q1 layer-1
    w1 = w1.at[H:H2, :].set(w1b.T)                # q2 layer-1

    w2 = jnp.zeros((P, P), jnp.float32)
    w2 = w2.at[0:H, 0:H].set(w2a.T)               # q1 layer-2 (block-diag)
    w2 = w2.at[H:H2, H:H2].set(w2b.T)             # q2 layer-2 (block-diag)

    w3 = jnp.zeros((8, P), jnp.float32)
    w3 = w3.at[0, 0:H].set(w3a.reshape(-1))       # q1 head -> row 0
    w3 = w3.at[1, H:H2].set(w3b.reshape(-1))      # q2 head -> row 1

    b = jnp.zeros((3, P, 1), jnp.float32)
    b = b.at[0, 0:H, 0].set(b1a.reshape(-1))
    b = b.at[0, H:H2, 0].set(b1b.reshape(-1))
    b = b.at[1, 0:H, 0].set(b2a.reshape(-1))
    b = b.at[1, H:H2, 0].set(b2b.reshape(-1))
    b = b.at[2, 0, 0].set(b3a.reshape(-1)[0])
    b = b.at[2, 1, 0].set(b3b.reshape(-1)[0])

    return (w1.astype(compute_dtype), w2.astype(compute_dtype),
            w3.astype(compute_dtype), b)


# ----------------------------------------------------------------------------
# Wrapper == DoubleCritic.forward (jitted; takes the pre-packed slabs).
# ----------------------------------------------------------------------------
_MAX_BLOCK_B = 4096   # batch-lane cap per grid step (VMEM / pipelining budget)


@jax.jit
def double_critic_forward(x, w1, w2, w3, b):
    """x: (B, obs_dim + act_dim) float32. Returns min(Q1(x), Q2(x)) of shape (B, 1)."""
    B, D = x.shape
    P = w2.shape[0]

    gen = _tpu_generation()
    n_tc = 2 if gen >= 7 else 1       # v7x: 2 TensorCores/chip; v5e/v6e: 1
    tanh_bf16 = gen >= 6              # v6e/v7x have bf16 EUP/VPU; v5e does not

    # Grid sizing: 1 step on single-TC chips (extra steps are pure loop
    # overhead there), >= n_tc "parallel" steps so both TCs get work on v7x.
    steps = max(n_tc, pl.cdiv(B, _MAX_BLOCK_B))
    Bp = _round_up(B, 128 * steps)
    block_b = Bp // steps
    xp = x if Bp == B else jnp.pad(x, ((0, Bp - B), (0, 0)))

    # Explicit VMEM budget (2x headroom): double-buffered x tiles + resident
    # weights/biases + f32 activations + output tile.  Kept well under v7x's
    # 64 MiB physical VMEM.
    vmem_bytes = (2 * block_b * D * 4
                  + (P * D + P * P + 8 * P) * 2
                  + 3 * P * 4
                  + 3 * P * block_b * 4
                  + 2 * block_b * 4)
    vmem_limit = int(min(64 * 1024 * 1024, max(16 * 1024 * 1024, 2 * vmem_bytes)))

    kernel = functools.partial(double_critic_kernel, tanh_bf16=tanh_bf16)
    out = pl.pallas_call(
        kernel,
        out_shape=jax.ShapeDtypeStruct((1, Bp), jnp.float32),
        grid_spec=pltpu.PrefetchScalarGridSpec(
            num_scalar_prefetch=0,
            grid=(steps,),
            in_specs=[
                # Raw (B, D) f32 input tile, pipelined over the batch grid.
                pl.BlockSpec((block_b, D), lambda i: (i, 0)),
                # Parameter slabs: constant index_map -> fetched once, resident.
                pl.BlockSpec((P, D), lambda i: (0, 0)),
                pl.BlockSpec((P, P), lambda i: (0, 0)),
                pl.BlockSpec((8, P), lambda i: (0, 0)),
                pl.BlockSpec((3, P, 1), lambda i: (0, 0, 0)),
            ],
            out_specs=pl.BlockSpec((1, block_b), lambda i: (0, i)),
        ),
        compiler_params=pltpu.CompilerParams(
            dimension_semantics=("parallel",),
            vmem_limit_bytes=vmem_limit,
        ),
    )(xp, w1, w2, w3, b)
    return out[0, :B].reshape(B, 1)


# ----------------------------------------------------------------------------
# Init + references
# ----------------------------------------------------------------------------
def init_qnet_params(key, in_dim, hidden, out_dim=1):
    """nn.Linear-shaped params, stored (in_features, out_features)."""
    ks = jax.random.split(key, 6)

    def linear(kw, kb, fan_in, fan_out):
        bound = 1.0 / jnp.sqrt(fan_in)
        w = jax.random.uniform(kw, (fan_in, fan_out), jnp.float32, -bound, bound)
        b = jax.random.uniform(kb, (1, fan_out), jnp.float32, -bound, bound)
        return w, b

    w1, b1 = linear(ks[0], ks[1], in_dim, hidden)
    w2, b2 = linear(ks[2], ks[3], hidden, hidden)
    w3, b3 = linear(ks[4], ks[5], hidden, out_dim)
    return (w1, b1, w2, b2, w3, b3)


def reference_forward(x, params1, params2, matmul_dtype=jnp.float32):
    """Two-tower reference; matmul_dtype mirrors the kernel's operand precision."""
    def qnet(xv, p):
        w1, b1, w2, b2, w3, b3 = p
        h = xv.astype(matmul_dtype)
        h = jnp.tanh(jnp.dot(h, w1.astype(matmul_dtype),
                             preferred_element_type=jnp.float32) + b1)
        h = h.astype(matmul_dtype)
        h = jnp.tanh(jnp.dot(h, w2.astype(matmul_dtype),
                             preferred_element_type=jnp.float32) + b2)
        h = h.astype(matmul_dtype)
        return jnp.dot(h, w3.astype(matmul_dtype),
                       preferred_element_type=jnp.float32) + b3
    return jnp.minimum(qnet(x, params1), qnet(x, params2))


if __name__ == "__main__":
    B, OBS, ACT, HIDDEN = 256, 26, 6, 32
    D = OBS + ACT  # 32

    key = jax.random.PRNGKey(0)
    kx, k1, k2 = jax.random.split(key, 3)

    x = jax.random.normal(kx, (B, D), jnp.float32)   # (batch, concat(obs, act))
    params1 = init_qnet_params(k1, D, HIDDEN)         # critic network 1
    params2 = init_qnet_params(k2, D, HIDDEN)         # critic network 2

    # Pack ONCE; the packed slabs are the canonical kernel-side parameter form.
    packed = jax.block_until_ready(pack_double_critic_params(params1, params2))

    out = jax.block_until_ready(double_critic_forward(x, *packed))
    assert out.shape == (B, 1)

    # Check against a reference mirroring the kernel's numerics (bf16 matmul
    # operands, f32 accumulation); tolerance allows for bf16 tanh on v6e/v7x.
    ref_bf16 = reference_forward(x, params1, params2, matmul_dtype=jnp.bfloat16)
    assert jnp.allclose(out, ref_bf16, atol=1.5e-2, rtol=1.5e-2), \
        float(jnp.max(jnp.abs(out - ref_bf16)))

    # Loose check against the full-f32 two-tower reference.
    ref_f32 = reference_forward(x, params1, params2, matmul_dtype=jnp.float32)
    assert jnp.allclose(out, ref_f32, atol=5e-2, rtol=5e-2), \
        float(jnp.max(jnp.abs(out - ref_f32)))

    print("KERNEL_OK")
</pallas_src>

<mosaic_0001>
module attributes {stable_mosaic.version = 11 : i64} {
  func.func @double_critic_kernel(%arg0: i32, %arg1: memref<256x32xf32, #tpu.memory_space<vmem>>, %arg2: memref<128x32xbf16, #tpu.memory_space<vmem>>, %arg3: memref<128x128xbf16, #tpu.memory_space<vmem>>, %arg4: memref<8x128xbf16, #tpu.memory_space<vmem>>, %arg5: memref<3x128x1xf32, #tpu.memory_space<vmem>>, %arg6: memref<1x256xf32, #tpu.memory_space<vmem>>) attributes {dimension_semantics = [#tpu.dimension_semantics<parallel>], iteration_bounds = array<i64: 1>, scalar_prefetch = 0 : i64, scratch_operands = 0 : i64, tpu.core_type = #tpu.core_type<tc>, window_params = [{transform_indices = @transform_0, window_bounds = array<i64: 256, 32>}, {pipeline_mode = #tpu.pipeline_mode<synchronous>, transform_indices = @transform_1, window_bounds = array<i64: 128, 32>}, {pipeline_mode = #tpu.pipeline_mode<synchronous>, transform_indices = @transform_2, window_bounds = array<i64: 128, 128>}, {pipeline_mode = #tpu.pipeline_mode<synchronous>, transform_indices = @transform_3, window_bounds = array<i64: 8, 128>}, {pipeline_mode = #tpu.pipeline_mode<synchronous>, transform_indices = @transform_4, window_bounds = array<i64: 3, 128, 1>}, {transform_indices = @transform_5, window_bounds = array<i64: 1, 256>}]} {
    %c0 = arith.constant 0 : index
    %c0_0 = arith.constant 0 : index
    %0 = vector.load %arg1[%c0, %c0_0] : memref<256x32xf32, #tpu.memory_space<vmem>>, vector<256x32xf32>
    %1 = arith.truncf %0 : vector<256x32xf32> to vector<256x32xbf16>
    %c0_1 = arith.constant 0 : index
    %c0_2 = arith.constant 0 : index
    %2 = vector.load %arg2[%c0_1, %c0_2] : memref<128x32xbf16, #tpu.memory_space<vmem>>, vector<128x32xbf16>
    %cst = arith.constant dense<0.000000e+00> : vector<128x256xf32>
    %3 = tpu.matmul %2, %1, %cst {dimension_numbers = #tpu.dot_dimension_numbers<[1], [1], [0], [0], [0, 0, 1, 0], [], []>} : vector<128x32xbf16>, vector<256x32xbf16>, vector<128x256xf32> -> vector<128x256xf32>
    %c0_3 = arith.constant 0 : index
    %c0_4 = arith.constant 0 : index
    %c0_5 = arith.constant 0 : index
    %4 = vector.load %arg5[%c0_3, %c0_4, %c0_5] : memref<3x128x1xf32, #tpu.memory_space<vmem>>, vector<1x128x1xf32>
    %5 = vector.shape_cast %4 : vector<1x128x1xf32> to vector<128x1xf32>
    %6 = vector.broadcast %5 : vector<128x1xf32> to vector<128x256xf32>
    %7 = arith.addf %3, %6 : vector<128x256xf32>
    %8 = math.tanh %7 : vector<128x256xf32>
    %9 = arith.truncf %8 : vector<128x256xf32> to vector<128x256xbf16>
    %c0_6 = arith.constant 0 : index
    %c0_7 = arith.constant 0 : index
    %10 = vector.load %arg3[%c0_6, %c0_7] : memref<128x128xbf16, #tpu.memory_space<vmem>>, vector<128x128xbf16>
    %cst_8 = arith.constant dense<0.000000e+00> : vector<128x256xf32>
    %11 = tpu.matmul %10, %9, %cst_8 {dimension_numbers = #tpu.dot_dimension_numbers<[1], [0], [0], [1], [0, 0, 1, 1], [], []>} : vector<128x128xbf16>, vector<128x256xbf16>, vector<128x256xf32> -> vector<128x256xf32>
    %c1 = arith.constant 1 : index
    %c0_9 = arith.constant 0 : index
    %c0_10 = arith.constant 0 : index
    %12 = vector.load %arg5[%c1, %c0_9, %c0_10] : memref<3x128x1xf32, #tpu.memory_space<vmem>>, vector<1x128x1xf32>
    %13 = vector.shape_cast %12 : vector<1x128x1xf32> to vector<128x1xf32>
    %14 = vector.broadcast %13 : vector<128x1xf32> to vector<128x256xf32>
    %15 = arith.addf %11, %14 : vector<128x256xf32>
    %16 = math.tanh %15 : vector<128x256xf32>
    %17 = arith.truncf %16 : vector<128x256xf32> to vector<128x256xbf16>
    %c0_11 = arith.constant 0 : index
    %c0_12 = arith.constant 0 : index
    %18 = vector.load %arg4[%c0_11, %c0_12] : memref<8x128xbf16, #tpu.memory_space<vmem>>, vector<8x128xbf16>
    %cst_13 = arith.constant dense<0.000000e+00> : vector<8x256xf32>
    %19 = tpu.matmul %18, %17, %cst_13 {dimension_numbers = #tpu.dot_dimension_numbers<[1], [0], [0], [1], [0, 0, 1, 1], [], []>} : vector<8x128xbf16>, vector<128x256xbf16>, vector<8x256xf32> -> vector<8x256xf32>
    %c2 = arith.constant 2 : index
    %c0_14 = arith.constant 0 : index
    %c0_15 = arith.constant 0 : index
    %20 = vector.load %arg5[%c2, %c0_14, %c0_15] : memref<3x128x1xf32, #tpu.memory_space<vmem>>, vector<1x128x1xf32>
    %21 = vector.shape_cast %20 : vector<1x128x1xf32> to vector<128x1xf32>
    %22 = vector.extract_strided_slice %21 {offsets = [0, 0], sizes = [8, 1], strides = [1, 1]} : vector<128x1xf32> to vector<8x1xf32>
    %23 = vector.broadcast %22 : vector<8x1xf32> to vector<8x256xf32>
    %24 = arith.addf %19, %23 : vector<8x256xf32>
    %25 = vector.extract_strided_slice %24 {offsets = [0, 0], sizes = [1, 256], strides = [1, 1]} : vector<8x256xf32> to vector<1x256xf32>
    %26 = vector.extract_strided_slice %24 {offsets = [1, 0], sizes = [1, 256], strides = [1, 1]} : vector<8x256xf32> to vector<1x256xf32>
    %27 = arith.minimumf %25, %26 : vector<1x256xf32>
    %c0_16 = arith.constant 0 : index
    %c0_17 = arith.constant 0 : index
    %28 = vector.load %arg6[%c0_16, %c0_17] : memref<1x256xf32, #tpu.memory_space<vmem>>, vector<1x256xf32>
    tpu.vector_store %arg6[%c0_16, %c0_17], %27 {strides = array<i32>} : memref<1x256xf32, #tpu.memory_space<vmem>>, vector<1x256xf32>,
    return
  }
  func.func @transform_0(%arg0: i32) -> (i32, i32) {
    %c0_i32 = arith.constant 0 : i32
    %c0_i32_0 = arith.constant 0 : i32
    return %arg0, %c0_i32 : i32, i32
  }
  func.func @transform_1(%arg0: i32) -> (i32, i32) {
    %c0_i32 = arith.constant 0 : i32
    %c0_i32_0 = arith.constant 0 : i32
    %c0_i32_1 = arith.constant 0 : i32
    return %c0_i32, %c0_i32_0 : i32, i32
  }
  func.func @transform_2(%arg0: i32) -> (i32, i32) {
    %c0_i32 = arith.constant 0 : i32
    %c0_i32_0 = arith.constant 0 : i32
    %c0_i32_1 = arith.constant 0 : i32
    return %c0_i32, %c0_i32_0 : i32, i32
  }
  func.func @transform_3(%arg0: i32) -> (i32, i32) {
    %c0_i32 = arith.constant 0 : i32
    %c0_i32_0 = arith.constant 0 : i32
    %c0_i32_1 = arith.constant 0 : i32
    return %c0_i32, %c0_i32_0 : i32, i32
  }
  func.func @transform_4(%arg0: i32) -> (i32, i32, i32) {
    %c0_i32 = arith.constant 0 : i32
    %c0_i32_0 = arith.constant 0 : i32
    %c0_i32_1 = arith.constant 0 : i32
    %c0_i32_2 = arith.constant 0 : i32
    return %c0_i32, %c0_i32_0, %c0_i32_1 : i32, i32, i32
  }
  func.func @transform_5(%arg0: i32) -> (i32, i32) {
    %c0_i32 = arith.constant 0 : i32
    %c0_i32_0 = arith.constant 0 : i32
    return %c0_i32, %arg0 : i32, i32
  }
}

</mosaic_0001>

<llo_original>
// kernel: double_critic_forward.1
$region0: #{double_critic_forward.1}
  #allocation0 [shape = 'u32[]', space=smem, size = 0x4, offset = 0x4, fixed_abs, tag = 'smem constant byte address 0x4 - core index']
  #allocation1 [shape = 'u32[144,128]{1,0:T(1,128)}', space=vmem, size = 0x12000, scoped, tag = 'internal scratch']
  %s0 = inlined_call_operand.vmem [shape: f32[256,32], index: 0, kind: input, shape index: {}]
  %s1 = inlined_call_operand.vmem [shape: bf16[128,32], index: 1, kind: input, shape index: {}]
  %s2 = inlined_call_operand.vmem [shape: bf16[128,128], index: 2, kind: input, shape index: {}]
  %s3 = inlined_call_operand.vmem [shape: bf16[8,128], index: 3, kind: input, shape index: {}]
  %s4 = inlined_call_operand.vmem [shape: f32[3,128,1], index: 4, kind: input, shape index: {}]
  %s5 = inlined_call_operand.hbm [shape: f32[1,256], index: 5, kind: output, shape index: {}]
  %s6 = sld [smem:[#allocation0]]
  $region30: #{double_critic_forward.1} parent=0
    _
  %s8 = ssub.s32 1, %s6
  %s9 = scalar_select 0, %s8, %s6
  $region1: #{double_critic_forward.1} parent=0
    #allocation2 [shape = 'u8[1024]{0}', space=vmem, size = 0x400, scoped, tag = 'output window, operand 0, single buffered']
    #allocation3 [shape = 's32[1]{0}', space=sflag, size = 0x4, scoped, tag = 'scoped memory for double_critic_forward.1']
    %10 = vsyncpa [#allocation3], 0
    // Predicated region
    $region2: #{double_critic_forward.1} parent=1 // pred_check
      _
    $region3: #{double_critic_forward.1} parent=1 // pred_check_branch
      %12 = sbr.rel (0) target = $region5
    $region4: #{double_critic_forward.1} parent=1 // pred_region
      _
    $region5: #{double_critic_forward.1} parent=1 // pred_fallthru
      _
    // Predicated region
    $region6: #{double_critic_forward.1} parent=1 // pred_check
      _
    $region7: #{double_critic_forward.1} parent=1 // pred_check_branch
      %14 = sbr.rel (0) target = $region9
    $region8: #{double_critic_forward.1} parent=1 // pred_region
      _
    $region9: #{double_critic_forward.1} parent=1 // pred_fallthru
      _
    // Predicated region
    $region10: #{double_critic_forward.1} parent=1 // pred_check
      _
    $region11: #{double_critic_forward.1} parent=1 // pred_check_branch
      %16 = sbr.rel (0) target = $region13
    $region12: #{double_critic_forward.1} parent=1 // pred_region
      _
    $region13: #{double_critic_forward.1} parent=1 // pred_fallthru
      _
    // Predicated region
    $region14: #{double_critic_forward.1} parent=1 // pred_check
      _
    $region15: #{double_critic_forward.1} parent=1 // pred_check_branch
      %18 = sbr.rel (0) target = $region17
    $region16: #{double_critic_forward.1} parent=1 // pred_region
      _
    $region17: #{double_critic_forward.1} parent=1 // pred_fallthru
      _
    // Predicated region
    $region18: #{double_critic_forward.1} parent=1 // pred_check
      _
    $region19: #{double_critic_forward.1} parent=1 // pred_check_branch
      %20 = sbr.rel (0) target = $region21
    $region20: #{double_critic_forward.1} parent=1 // pred_region
      _
    $region21: #{double_critic_forward.1} parent=1 // pred_fallthru
      _
    %v22 = vld [vmem:[%s0] sm:$0xff]
    %v23 = vld [vmem:[%s0 + $0x8] sm:$0xff]
    %v24 = vld [vmem:[%s0 + $0x10] sm:$0xff]
    %v25 = vld [vmem:[%s0 + $0x18] sm:$0xff]
    %v26 = vld [vmem:[%s0 + $0x20] sm:$0xff]
    %v27 = vld [vmem:[%s0 + $0x28] sm:$0xff]
    %v28 = vld [vmem:[%s0 + $0x30] sm:$0xff]
    %v29 = vld [vmem:[%s0 + $0x38] sm:$0xff]
    %v30 = vld [vmem:[%s0 + $0x40] sm:$0xff]
    %v31 = vld [vmem:[%s0 + $0x48] sm:$0xff]
    %v32 = vld [vmem:[%s0 + $0x50] sm:$0xff]
    %v33 = vld [vmem:[%s0 + $0x58] sm:$0xff]
    %v34 = vld [vmem:[%s0 + $0x60] sm:$0xff]
    %v35 = vld [vmem:[%s0 + $0x68] sm:$0xff]
    %v36 = vld [vmem:[%s0 + $0x70] sm:$0xff]
    %v37 = vld [vmem:[%s0 + $0x78] sm:$0xff]
    %v38 = vld [vmem:[%s0 + $0x80] sm:$0xff]
    %v39 = vld [vmem:[%s0 + $0x88] sm:$0xff]
    %v40 = vld [vmem:[%s0 + $0x90] sm:$0xff]
    %v41 = vld [vmem:[%s0 + $0x98] sm:$0xff]
    %v42 = vld [vmem:[%s0 + $0xa0] sm:$0xff]
    %v43 = vld [vmem:[%s0 + $0xa8] sm:$0xff]
    %v44 = vld [vmem:[%s0 + $0xb0] sm:$0xff]
    %v45 = vld [vmem:[%s0 + $0xb8] sm:$0xff]
    %v46 = vld [vmem:[%s0 + $0xc0] sm:$0xff]
    %v47 = vld [vmem:[%s0 + $0xc8] sm:$0xff]
    %v48 = vld [vmem:[%s0 + $0xd0] sm:$0xff]
    %v49 = vld [vmem:[%s0 + $0xd8] sm:$0xff]
    %v50 = vld [vmem:[%s0 + $0xe0] sm:$0xff]
    %v51 = vld [vmem:[%s0 + $0xe8] sm:$0xff]
    %v52 = vld [vmem:[%s0 + $0xf0] sm:$0xff]
    %v53 = vld [vmem:[%s0 + $0xf8] sm:$0xff]
    %v54 = vpack.c.bf16 %v23, %v22
    %v55 = vpack.c.bf16 %v25, %v24
    %v56 = vpack.c.bf16 %v27, %v26
    %v57 = vpack.c.bf16 %v29, %v28
    %v58 = vpack.c.bf16 %v31, %v30
    %v59 = vpack.c.bf16 %v33, %v32
    %v60 = vpack.c.bf16 %v35, %v34
    %v61 = vpack.c.bf16 %v37, %v36
    %v62 = vpack.c.bf16 %v39, %v38
    %v63 = vpack.c.bf16 %v41, %v40
    %v64 = vpack.c.bf16 %v43, %v42
    %v65 = vpack.c.bf16 %v45, %v44
    %v66 = vpack.c.bf16 %v47, %v46
    %v67 = vpack.c.bf16 %v49, %v48
    %v68 = vpack.c.bf16 %v51, %v50
    %v69 = vpack.c.bf16 %v53, %v52
    %v70 = vld [vmem:[%s1] sm:$0xf]
    %v71 = vld [vmem:[%s1 + $0x4] sm:$0xf]
    %v72 = vld [vmem:[%s1 + $0x8] sm:$0xf]
    %v73 = vld [vmem:[%s1 + $0xc] sm:$0xf]
    %v74 = vld [vmem:[%s1 + $0x10] sm:$0xf]
    %v75 = vld [vmem:[%s1 + $0x14] sm:$0xf]
    %v76 = vld [vmem:[%s1 + $0x18] sm:$0xf]
    %v77 = vld [vmem:[%s1 + $0x1c] sm:$0xf]
    %v78 = vld [vmem:[%s1 + $0x20] sm:$0xf]
    %v79 = vld [vmem:[%s1 + $0x24] sm:$0xf]
    %v80 = vld [vmem:[%s1 + $0x28] sm:$0xf]
    %v81 = vld [vmem:[%s1 + $0x2c] sm:$0xf]
    %v82 = vld [vmem:[%s1 + $0x30] sm:$0xf]
    %v83 = vld [vmem:[%s1 + $0x34] sm:$0xf]
    %v84 = vld [vmem:[%s1 + $0x38] sm:$0xf]
    %v85 = vld [vmem:[%s1 + $0x3c] sm:$0xf]
    %v86 = vld [vmem:[%s4] sm:$0xff]
    %v87 = vld [vmem:[%s4 + $0x8] sm:$0xff]
    %v88 = vld [vmem:[%s4 + $0x10] sm:$0xff]
    %v89 = vld [vmem:[%s4 + $0x18] sm:$0xff]
    %v90 = vld [vmem:[%s4 + $0x20] sm:$0xff]
    %v91 = vld [vmem:[%s4 + $0x28] sm:$0xff]
    %v92 = vld [vmem:[%s4 + $0x30] sm:$0xff]
    %v93 = vld [vmem:[%s4 + $0x38] sm:$0xff]
    %v94 = vld [vmem:[%s4 + $0x40] sm:$0xff]
    %v95 = vld [vmem:[%s4 + $0x48] sm:$0xff]
    %v96 = vld [vmem:[%s4 + $0x50] sm:$0xff]
    %v97 = vld [vmem:[%s4 + $0x58] sm:$0xff]
    %v98 = vld [vmem:[%s4 + $0x60] sm:$0xff]
    %v99 = vld [vmem:[%s4 + $0x68] sm:$0xff]
    %v100 = vld [vmem:[%s4 + $0x70] sm:$0xff]
    %v101 = vld [vmem:[%s4 + $0x78] sm:$0xff]
    %103 = vset.pattern.permute.xlu0 0
    %104 = vperm.xlu0 %103, %v86
    %v105 = vpop.permute.xlu0 %104
    %108 = vset.pattern.permute.xlu0 0
    %109 = vperm.xlu0 %108, %v87
    %v110 = vpop.permute.xlu0 %109
    %113 = vset.pattern.permute.xlu0 0
    %114 = vperm.xlu0 %113, %v88
    %v115 = vpop.permute.xlu0 %114
    %118 = vset.pattern.permute.xlu0 0
    %119 = vperm.xlu0 %118, %v89
    %v120 = vpop.permute.xlu0 %119
    %123 = vset.pattern.permute.xlu0 0
    %124 = vperm.xlu0 %123, %v90
    %v125 = vpop.permute.xlu0 %124
    %128 = vset.pattern.permute.xlu0 0
    %129 = vperm.xlu0 %128, %v91
    %v130 = vpop.permute.xlu0 %129
    %133 = vset.pattern.permute.xlu0 0
    %134 = vperm.xlu0 %133, %v92
    %v135 = vpop.permute.xlu0 %134
    %138 = vset.pattern.permute.xlu0 0
    %139 = vperm.xlu0 %138, %v93
    %v140 = vpop.permute.xlu0 %139
    %143 = vset.pattern.permute.xlu0 0
    %144 = vperm.xlu0 %143, %v94
    %v145 = vpop.permute.xlu0 %144
    %148 = vset.pattern.permute.xlu0 0
    %149 = vperm.xlu0 %148, %v95
    %v150 = vpop.permute.xlu0 %149
    %153 = vset.pattern.permute.xlu0 0
    %154 = vperm.xlu0 %153, %v96
    %v155 = vpop.permute.xlu0 %154
    %158 = vset.pattern.permute.xlu0 0
    %159 = vperm.xlu0 %158, %v97
    %v160 = vpop.permute.xlu0 %159
    %163 = vset.pattern.permute.xlu0 0
    %164 = vperm.xlu0 %163, %v98
    %v165 = vpop.permute.xlu0 %164
    %168 = vset.pattern.permute.xlu0 0
    %169 = vperm.xlu0 %168, %v99
    %v170 = vpop.permute.xlu0 %169
    %173 = vset.pattern.permute.xlu0 0
    %174 = vperm.xlu0 %173, %v100
    %v175 = vpop.permute.xlu0 %174
    %178 = vset.pattern.permute.xlu0 0
    %179 = vperm.xlu0 %178, %v101
    %v180 = vpop.permute.xlu0 %179
    %v198 = vunpack.c.l.b16 %v70
    %v199 = vunpack.c.l.b16 %v71
    %v200 = vunpack.c.l.b16 %v72
    %v201 = vunpack.c.l.b16 %v73
    %v202 = vunpack.c.l.b16 %v74
    %v203 = vunpack.c.l.b16 %v75
    %v204 = vunpack.c.l.b16 %v76
    %v205 = vunpack.c.l.b16 %v77
    %v206 = vunpack.c.l.b16 %v78
    %v207 = vunpack.c.l.b16 %v79
    %v208 = vunpack.c.l.b16 %v80
    %v209 = vunpack.c.l.b16 %v81
    %v210 = vunpack.c.l.b16 %v82
    %v211 = vunpack.c.l.b16 %v83
    %v212 = vunpack.c.l.b16 %v84
    %v213 = vunpack.c.l.b16 %v85
    %v214 = vpack.c.b16 %v199, %v198
    %v215 = vpack.c.b16 %v201, %v200
    %v216 = vpack.c.b16 %v203, %v202
    %v217 = vpack.c.b16 %v205, %v204
    %v218 = vpack.c.b16 %v207, %v206
    %v219 = vpack.c.b16 %v209, %v208
    %v220 = vpack.c.b16 %v211, %v210
    %v221 = vpack.c.b16 %v213, %v212
    %vm222 = vcmask 261120
    %v224 = vsel %vm222, %v214, 0
    %v227 = vsel %vm222, %v215, 0
    %v230 = vsel %vm222, %v216, 0
    %v233 = vsel %vm222, %v217, 0
    %v236 = vsel %vm222, %v218, 0
    %v239 = vsel %vm222, %v219, 0
    %v242 = vsel %vm222, %v220, 0
    %v245 = vsel %vm222, %v221, 0
    %v248 = vsel %vm222, %v54, 0
    %v251 = vsel %vm222, %v55, 0
    %v254 = vsel %vm222, %v56, 0
    %v257 = vsel %vm222, %v57, 0
    %v260 = vsel %vm222, %v58, 0
    %v263 = vsel %vm222, %v59, 0
    %v266 = vsel %vm222, %v60, 0
    %v269 = vsel %vm222, %v61, 0
    %v272 = vsel %vm222, %v62, 0
    %v275 = vsel %vm222, %v63, 0
    %v278 = vsel %vm222, %v64, 0
    %v281 = vsel %vm222, %v65, 0
    %v284 = vsel %vm222, %v66, 0
    %v287 = vsel %vm222, %v67, 0
    %v290 = vsel %vm222, %v68, 0
    %v293 = vsel %vm222, %v69, 0
    %295 = vmatprep.subr.bf16.mxu0 0
    %296 = vmatpush1.bf16.xpose.msra.mxu0 %v269
    %297 = vmatprep.subr.bf16.mxu0 0
    %298 = vmatpush1.bf16.xpose.msra.mxu0 %v266
    %299 = vmatprep.subr.bf16.mxu0 0
    %300 = vmatpush1.bf16.xpose.msra.mxu0 %v263
    %301 = vmatprep.subr.bf16.mxu0 0
    %302 = vmatpush1.bf16.xpose.msra.mxu0 %v260
    %303 = vmatprep.subr.bf16.mxu0 0
    %304 = vmatpush1.bf16.xpose.msra.mxu0 %v257
    %305 = vmatprep.subr.bf16.mxu0 0
    %306 = vmatpush1.bf16.xpose.msra.mxu0 %v254
    %307 = vmatprep.subr.bf16.mxu0 0
    %308 = vmatpush1.bf16.xpose.msra.mxu0 %v251
    %309 = vmatprep.subr.bf16.mxu0 0
    %310 = vmatpush1.bf16.xpose.msra.mxu0 %v248
    %311 = vmatprep.subr.bf16.mxu0 0
    %312 = vmatpush2.bf16.xpose.msra.mxu0 %v293
    %313 = vmatprep.subr.bf16.mxu0 0
    %314 = vmatpush2.bf16.xpose.msra.mxu0 %v290
    %315 = vmatprep.subr.bf16.mxu0 0
    %316 = vmatpush2.bf16.xpose.msra.mxu0 %v287
    %317 = vmatprep.subr.bf16.mxu0 0
    %318 = vmatpush2.bf16.xpose.msra.mxu0 %v284
    %319 = vmatprep.subr.bf16.mxu0 0
    %320 = vmatpush2.bf16.xpose.msra.mxu0 %v281
    %321 = vmatprep.subr.bf16.mxu0 0
    %322 = vmatpush2.bf16.xpose.msra.mxu0 %v278
    %323 = vmatprep.subr.bf16.mxu0 0
    %324 = vmatpush2.bf16.xpose.msra.mxu0 %v275
    %325 = vmatprep.subr.bf16.mxu0 0
    %326 = vmatpush2.bf16.xpose.msra.mxu0 %v272
    %327 = vmatprep.mubr.bf16.mxu0 0
    %328 = vmatmul.mubr.bf16.gmra.mxu0 %v224
    %v329 = vpop.f32.mrf.mxu0
    %v330 = vadd.f32 %v105, %v329
    %v331 = vpop.f32.mrf.mxu0
    %v332 = vadd.f32 %v105, %v331
    %v333 = vpop.f32.mrf.mxu0
    %v334 = vadd.f32 %v110, %v333
    %v335 = vpop.f32.mrf.mxu0
    %v336 = vadd.f32 %v110, %v335
    %337 = vmatprep.mubr.bf16.mxu0 0
    %338 = vmatmul.mubr.bf16.gmra.mxu0 %v227
    %v339 = vpop.f32.mrf.mxu0
    %v340 = vadd.f32 %v115, %v339
    %v341 = vpop.f32.mrf.mxu0
    %v342 = vadd.f32 %v115, %v341
    %v343 = vpop.f32.mrf.mxu0
    %v344 = vadd.f32 %v120, %v343
    %v345 = vpop.f32.mrf.mxu0
    %v346 = vadd.f32 %v120, %v345
    %347 = vmatprep.mubr.bf16.mxu0 0
    %348 = vmatmul.mubr.bf16.gmra.mxu0 %v230
    %v349 = vpop.f32.mrf.mxu0
    %v350 = vadd.f32 %v125, %v349
    %v351 = vpop.f32.mrf.mxu0
    %v352 = vadd.f32 %v125, %v351
    %v353 = vpop.f32.mrf.mxu0
    %v354 = vadd.f32 %v130, %v353
    %v355 = vpop.f32.mrf.mxu0
    %v356 = vadd.f32 %v130, %v355
    %357 = vmatprep.mubr.bf16.mxu0 0
    %358 = vmatmul.mubr.bf16.gmra.mxu0 %v233
    %v359 = vpop.f32.mrf.mxu0
    %v360 = vadd.f32 %v135, %v359
    %v361 = vpop.f32.mrf.mxu0
    %v362 = vadd.f32 %v135, %v361
    %v363 = vpop.f32.mrf.mxu0
    %v364 = vadd.f32 %v140, %v363
    %v365 = vpop.f32.mrf.mxu0
    %v366 = vadd.f32 %v140, %v365
    %367 = vmatprep.mubr.bf16.mxu0 0
    %368 = vmatmul.mubr.bf16.gmra.mxu0 %v236
    %v369 = vpop.f32.mrf.mxu0
    %v370 = vadd.f32 %v145, %v369
    %v371 = vpop.f32.mrf.mxu0
    %v372 = vadd.f32 %v145, %v371
    %v373 = vpop.f32.mrf.mxu0
    %v374 = vadd.f32 %v150, %v373
    %v375 = vpop.f32.mrf.mxu0
    %v376 = vadd.f32 %v150, %v375
    %377 = vmatprep.mubr.bf16.mxu0 0
    %378 = vmatmul.mubr.bf16.gmra.mxu0 %v239
    %v379 = vpop.f32.mrf.mxu0
    %v380 = vadd.f32 %v155, %v379
    %v381 = vpop.f32.mrf.mxu0
    %v382 = vadd.f32 %v155, %v381
    %v383 = vpop.f32.mrf.mxu0
    %v384 = vadd.f32 %v160, %v383
    %v385 = vpop.f32.mrf.mxu0
    %v386 = vadd.f32 %v160, %v385
    %387 = vmatprep.mubr.bf16.mxu0 0
    %388 = vmatmul.mubr.bf16.gmra.mxu0 %v242
    %v389 = vpop.f32.mrf.mxu0
    %v390 = vadd.f32 %v165, %v389
    %v391 = vpop.f32.mrf.mxu0
    %v392 = vadd.f32 %v165, %v391
    %v393 = vpop.f32.mrf.mxu0
    %v394 = vadd.f32 %v170, %v393
    %v395 = vpop.f32.mrf.mxu0
    %v396 = vadd.f32 %v170, %v395
    %397 = vmatprep.mubr.bf16.mxu0 0
    %398 = vmatmul.mubr.bf16.gmra.mxu0 %v245
    %v399 = vpop.f32.mrf.mxu0
    %v400 = vadd.f32 %v175, %v399
    %v401 = vpop.f32.mrf.mxu0
    %v402 = vadd.f32 %v175, %v401
    %v403 = vpop.f32.mrf.mxu0
    %v404 = vadd.f32 %v180, %v403
    %v405 = vpop.f32.mrf.mxu0
    %v406 = vadd.f32 %v180, %v405
    %407 = vdwg.mxu0
    %v408 = vtanh.pop %v330
    %v409 = vtanh.pop %v332
    %v410 = vtanh.pop %v334
    %v411 = vtanh.pop %v336
    %v412 = vtanh.pop %v340
    %v413 = vtanh.pop %v342
    %v414 = vtanh.pop %v344
    %v415 = vtanh.pop %v346
    %v416 = vtanh.pop %v350
    %v417 = vtanh.pop %v352
    %v418 = vtanh.pop %v354
    %v419 = vtanh.pop %v356
    %v420 = vtanh.pop %v360
    %v421 = vtanh.pop %v362
    %v422 = vtanh.pop %v364
    %v423 = vtanh.pop %v366
    %v424 = vtanh.pop %v370
    %v425 = vtanh.pop %v372
    %v426 = vtanh.pop %v374
    %v427 = vtanh.pop %v376
    %v428 = vtanh.pop %v380
    %v429 = vtanh.pop %v382
    %v430 = vtanh.pop %v384
    %v431 = vtanh.pop %v386
    %v432 = vtanh.pop %v390
    %v433 = vtanh.pop %v392
    %v434 = vtanh.pop %v394
    %v435 = vtanh.pop %v396
    %v436 = vtanh.pop %v400
    %v437 = vtanh.pop %v402
    %v438 = vtanh.pop %v404
    %v439 = vtanh.pop %v406
    %v440 = vpack.c.bf16 %v410, %v408
    %v441 = vpack.c.bf16 %v411, %v409
    %v442 = vpack.c.bf16 %v414, %v412
    %v443 = vpack.c.bf16 %v415, %v413
    %v444 = vpack.c.bf16 %v418, %v416
    %v445 = vpack.c.bf16 %v419, %v417
    %v446 = vpack.c.bf16 %v422, %v420
    %v447 = vpack.c.bf16 %v423, %v421
    %v448 = vpack.c.bf16 %v426, %v424
    %v449 = vpack.c.bf16 %v427, %v425
    %v450 = vpack.c.bf16 %v430, %v428
    %v451 = vpack.c.bf16 %v431, %v429
    %v452 = vpack.c.bf16 %v434, %v432
    %v453 = vpack.c.bf16 %v435, %v433
    %v454 = vpack.c.bf16 %v438, %v436
    %v455 = vpack.c.bf16 %v439, %v437
    %v456 = vld [vmem:[%s2] sm:$0xf]
    %v457 = vld [vmem:[%s2 + $0x4] sm:$0xf]
    %v458 = vld [vmem:[%s2 + $0x8] sm:$0xf]
    %v459 = vld [vmem:[%s2 + $0xc] sm:$0xf]
    %v460 = vld [vmem:[%s2 + $0x10] sm:$0xf]
    %v461 = vld [vmem:[%s2 + $0x14] sm:$0xf]
    %v462 = vld [vmem:[%s2 + $0x18] sm:$0xf]
    %v463 = vld [vmem:[%s2 + $0x1c] sm:$0xf]
    %v464 = vld [vmem:[%s2 + $0x20] sm:$0xf]
    %v465 = vld [vmem:[%s2 + $0x24] sm:$0xf]
    %v466 = vld [vmem:[%s2 + $0x28] sm:$0xf]
    %v467 = vld [vmem:[%s2 + $0x2c] sm:$0xf]
    %v468 = vld [vmem:[%s2 + $0x30] sm:$0xf]
    %v469 = vld [vmem:[%s2 + $0x34] sm:$0xf]
    %v470 = vld [vmem:[%s2 + $0x38] sm:$0xf]
    %v471 = vld [vmem:[%s2 + $0x3c] sm:$0xf]
    %s472 = scalar_lea.vmem %s4, 128
    %v473 = vld [vmem:[%s472] sm:$0xff]
    %v474 = vld [vmem:[%s472 + $0x8] sm:$0xff]
    %v475 = vld [vmem:[%s472 + $0x10] sm:$0xff]
    %v476 = vld [vmem:[%s472 + $0x18] sm:$0xff]
    %v477 = vld [vmem:[%s472 + $0x20] sm:$0xff]
    %v478 = vld [vmem:[%s472 + $0x28] sm:$0xff]
    %v479 = vld [vmem:[%s472 + $0x30] sm:$0xff]
    %v480 = vld [vmem:[%s472 + $0x38] sm:$0xff]
    %v481 = vld [vmem:[%s472 + $0x40] sm:$0xff]
    %v482 = vld [vmem:[%s472 + $0x48] sm:$0xff]
    %v483 = vld [vmem:[%s472 + $0x50] sm:$0xff]
    %v484 = vld [vmem:[%s472 + $0x58] sm:$0xff]
    %v485 = vld [vmem:[%s472 + $0x60] sm:$0xff]
    %v486 = vld [vmem:[%s472 + $0x68] sm:$0xff]
    %v487 = vld [vmem:[%s472 + $0x70] sm:$0xff]
    %v488 = vld [vmem:[%s472 + $0x78] sm:$0xff]
    %490 = vset.pattern.permute.xlu0 0
    %491 = vperm.xlu0 %490, %v473
    %v492 = vpop.permute.xlu0 %491
    %495 = vset.pattern.permute.xlu0 0
    %496 = vperm.xlu0 %495, %v474
    %v497 = vpop.permute.xlu0 %496
    %500 = vset.pattern.permute.xlu0 0
    %501 = vperm.xlu0 %500, %v475
    %v502 = vpop.permute.xlu0 %501
    %505 = vset.pattern.permute.xlu0 0
    %506 = vperm.xlu0 %505, %v476
    %v507 = vpop.permute.xlu0 %506
    %510 = vset.pattern.permute.xlu0 0
    %511 = vperm.xlu0 %510, %v477
    %v512 = vpop.permute.xlu0 %511
    %515 = vset.pattern.permute.xlu0 0
    %516 = vperm.xlu0 %515, %v478
    %v517 = vpop.permute.xlu0 %516
    %520 = vset.pattern.permute.xlu0 0
    %521 = vperm.xlu0 %520, %v479
    %v522 = vpop.permute.xlu0 %521
    %525 = vset.pattern.permute.xlu0 0
    %526 = vperm.xlu0 %525, %v480
    %v527 = vpop.permute.xlu0 %526
    %530 = vset.pattern.permute.xlu0 0
    %531 = vperm.xlu0 %530, %v481
    %v532 = vpop.permute.xlu0 %531
    %535 = vset.pattern.permute.xlu0 0
    %536 = vperm.xlu0 %535, %v482
    %v537 = vpop.permute.xlu0 %536
    %540 = vset.pattern.permute.xlu0 0
    %541 = vperm.xlu0 %540, %v483
    %v542 = vpop.permute.xlu0 %541
    %545 = vset.pattern.permute.xlu0 0
    %546 = vperm.xlu0 %545, %v484
    %v547 = vpop.permute.xlu0 %546
    %550 = vset.pattern.permute.xlu0 0
    %551 = vperm.xlu0 %550, %v485
    %v552 = vpop.permute.xlu0 %551
    %555 = vset.pattern.permute.xlu0 0
    %556 = vperm.xlu0 %555, %v486
    %v557 = vpop.permute.xlu0 %556
    %560 = vset.pattern.permute.xlu0 0
    %561 = vperm.xlu0 %560, %v487
    %v562 = vpop.permute.xlu0 %561
    %565 = vset.pattern.permute.xlu0 0
    %566 = vperm.xlu0 %565, %v488
    %v567 = vpop.permute.xlu0 %566
    %v585 = vunpack.c.l.b16 %v456
    %v586 = vunpack.c.l.b16 %v457
    %v587 = vunpack.c.l.b16 %v458
    %v588 = vunpack.c.l.b16 %v459
    %v589 = vunpack.c.l.b16 %v460
    %v590 = vunpack.c.l.b16 %v461
    %v591 = vunpack.c.l.b16 %v462
    %v592 = vunpack.c.l.b16 %v463
    %v593 = vunpack.c.l.b16 %v464
    %v594 = vunpack.c.l.b16 %v465
    %v595 = vunpack.c.l.b16 %v466
    %v596 = vunpack.c.l.b16 %v467
    %v597 = vunpack.c.l.b16 %v468
    %v598 = vunpack.c.l.b16 %v469
    %v599 = vunpack.c.l.b16 %v470
    %v600 = vunpack.c.l.b16 %v471
    %v601 = vpack.c.b16 %v586, %v585
    %v602 = vpack.c.b16 %v588, %v587
    %v603 = vpack.c.b16 %v590, %v589
    %v604 = vpack.c.b16 %v592, %v591
    %v605 = vpack.c.b16 %v594, %v593
    %v606 = vpack.c.b16 %v596, %v595
    %v607 = vpack.c.b16 %v598, %v597
    %v608 = vpack.c.b16 %v600, %v599
    %617 = vmatprep.subr.bf16.mxu0 %v455
    %618 = vmatpush1.bf16.msra.mxu0 %v454
    %619 = vmatprep.subr.bf16.mxu0 %v453
    %620 = vmatpush1.bf16.msra.mxu0 %v452
    %621 = vmatprep.subr.bf16.mxu0 %v451
    %622 = vmatpush1.bf16.msra.mxu0 %v450
    %623 = vmatprep.subr.bf16.mxu0 %v449
    %624 = vmatpush1.bf16.msra.mxu0 %v448
    %625 = vmatprep.subr.bf16.mxu0 %v447
    %626 = vmatpush1.bf16.msra.mxu0 %v446
    %627 = vmatprep.subr.bf16.mxu0 %v445
    %628 = vmatpush1.bf16.msra.mxu0 %v444
    %629 = vmatprep.subr.bf16.mxu0 %v443
    %630 = vmatpush1.bf16.msra.mxu0 %v442
    %631 = vmatprep.subr.bf16.mxu0 %v441
    %632 = vmatpush1.bf16.msra.mxu0 %v440
    %633 = vmatprep.subr.bf16.mxu0 0
    %634 = vmatpush2.bf16.msra.mxu0 0
    %635 = vmatprep.subr.bf16.mxu0 0
    %636 = vmatpush2.bf16.msra.mxu0 0
    %637 = vmatprep.subr.bf16.mxu0 0
    %638 = vmatpush2.bf16.msra.mxu0 0
    %639 = vmatprep.subr.bf16.mxu0 0
    %640 = vmatpush2.bf16.msra.mxu0 0
    %641 = vmatprep.subr.bf16.mxu0 0
    %642 = vmatpush2.bf16.msra.mxu0 0
    %643 = vmatprep.subr.bf16.mxu0 0
    %644 = vmatpush2.bf16.msra.mxu0 0
    %645 = vmatprep.subr.bf16.mxu0 0
    %646 = vmatpush2.bf16.msra.mxu0 0
    %647 = vmatprep.subr.bf16.mxu0 0
    %648 = vmatpush2.bf16.msra.mxu0 0
    %649 = vmatprep.mubr.bf16.mxu0 0
    %650 = vmatmul.mubr.bf16.gmra.mxu0 %v601
    %v651 = vpop.f32.mrf.mxu0
    %v652 = vadd.f32 %v492, %v651
    %v653 = vpop.f32.mrf.mxu0
    %v654 = vadd.f32 %v492, %v653
    %v655 = vpop.f32.mrf.mxu0
    %v656 = vadd.f32 %v497, %v655
    %v657 = vpop.f32.mrf.mxu0
    %v658 = vadd.f32 %v497, %v657
    %659 = vmatprep.mubr.bf16.mxu0 0
    %660 = vmatmul.mubr.bf16.gmra.mxu0 %v602
    %v661 = vpop.f32.mrf.mxu0
    %v662 = vadd.f32 %v502, %v661
    %v663 = vpop.f32.mrf.mxu0
    %v664 = vadd.f32 %v502, %v663
    %v665 = vpop.f32.mrf.mxu0
    %v666 = vadd.f32 %v507, %v665
    %v667 = vpop.f32.mrf.mxu0
    %v668 = vadd.f32 %v507, %v667
    %669 = vmatprep.mubr.bf16.mxu0 0
    %670 = vmatmul.mubr.bf16.gmra.mxu0 %v603
    %v671 = vpop.f32.mrf.mxu0
    %v672 = vadd.f32 %v512, %v671
    %v673 = vpop.f32.mrf.mxu0
    %v674 = vadd.f32 %v512, %v673
    %v675 = vpop.f32.mrf.mxu0
    %v676 = vadd.f32 %v517, %v675
    %v677 = vpop.f32.mrf.mxu0
    %v678 = vadd.f32 %v517, %v677
    %679 = vmatprep.mubr.bf16.mxu0 0
    %680 = vmatmul.mubr.bf16.gmra.mxu0 %v604
    %v681 = vpop.f32.mrf.mxu0
    %v682 = vadd.f32 %v522, %v681
    %v683 = vpop.f32.mrf.mxu0
    %v684 = vadd.f32 %v522, %v683
    %v685 = vpop.f32.mrf.mxu0
    %v686 = vadd.f32 %v527, %v685
    %v687 = vpop.f32.mrf.mxu0
    %v688 = vadd.f32 %v527, %v687
    %689 = vmatprep.mubr.bf16.mxu0 0
    %690 = vmatmul.mubr.bf16.gmra.mxu0 %v605
    %v691 = vpop.f32.mrf.mxu0
    %v692 = vadd.f32 %v532, %v691
    %v693 = vpop.f32.mrf.mxu0
    %v694 = vadd.f32 %v532, %v693
    %v695 = vpop.f32.mrf.mxu0
    %v696 = vadd.f32 %v537, %v695
    %v697 = vpop.f32.mrf.mxu0
    %v698 = vadd.f32 %v537, %v697
    %699 = vmatprep.mubr.bf16.mxu0 0
    %700 = vmatmul.mubr.bf16.gmra.mxu0 %v606
    %v701 = vpop.f32.mrf.mxu0
    %v702 = vadd.f32 %v542, %v701
    %v703 = vpop.f32.mrf.mxu0
    %v704 = vadd.f32 %v542, %v703
    %v705 = vpop.f32.mrf.mxu0
    %v706 = vadd.f32 %v547, %v705
    %v707 = vpop.f32.mrf.mxu0
    %v708 = vadd.f32 %v547, %v707
    %709 = vmatprep.mubr.bf16.mxu0 0
    %710 = vmatmul.mubr.bf16.gmra.mxu0 %v607
    %v711 = vpop.f32.mrf.mxu0
    %v712 = vadd.f32 %v552, %v711
    %v713 = vpop.f32.mrf.mxu0
    %v714 = vadd.f32 %v552, %v713
    %v715 = vpop.f32.mrf.mxu0
    %v716 = vadd.f32 %v557, %v715
    %v717 = vpop.f32.mrf.mxu0
    %v718 = vadd.f32 %v557, %v717
    %719 = vmatprep.mubr.bf16.mxu0 0
    %720 = vmatmul.mubr.bf16.gmra.mxu0 %v608
    %v721 = vpop.f32.mrf.mxu0
    %v722 = vadd.f32 %v562, %v721
    %v723 = vpop.f32.mrf.mxu0
    %v724 = vadd.f32 %v562, %v723
    %v725 = vpop.f32.mrf.mxu0
    %v726 = vadd.f32 %v567, %v725
    %v727 = vpop.f32.mrf.mxu0
    %v728 = vadd.f32 %v567, %v727
    %729 = vdwg.mxu0
    %v730 = vtanh.pop %v652
    %v731 = vtanh.pop %v654
    %v732 = vtanh.pop %v656
    %v733 = vtanh.pop %v658
    %v734 = vtanh.pop %v662
    %v735 = vtanh.pop %v664
    %v736 = vtanh.pop %v666
    %v737 = vtanh.pop %v668
    %v738 = vtanh.pop %v672
    %v739 = vtanh.pop %v674
    %v740 = vtanh.pop %v676
    %v741 = vtanh.pop %v678
    %v742 = vtanh.pop %v682
    %v743 = vtanh.pop %v684
    %v744 = vtanh.pop %v686
    %v745 = vtanh.pop %v688
    %v746 = vtanh.pop %v692
    %v747 = vtanh.pop %v694
    %v748 = vtanh.pop %v696
    %v749 = vtanh.pop %v698
    %v750 = vtanh.pop %v702
    %v751 = vtanh.pop %v704
    %v752 = vtanh.pop %v706
    %v753 = vtanh.pop %v708
    %v754 = vtanh.pop %v712
    %v755 = vtanh.pop %v714
    %v756 = vtanh.pop %v716
    %v757 = vtanh.pop %v718
    %v758 = vtanh.pop %v722
    %v759 = vtanh.pop %v724
    %v760 = vtanh.pop %v726
    %v761 = vtanh.pop %v728
    %v762 = vpack.c.bf16 %v732, %v730
    %v763 = vpack.c.bf16 %v733, %v731
    %v764 = vpack.c.bf16 %v736, %v734
    %v765 = vpack.c.bf16 %v737, %v735
    %v766 = vpack.c.bf16 %v740, %v738
    %v767 = vpack.c.bf16 %v741, %v739
    %v768 = vpack.c.bf16 %v744, %v742
    %v769 = vpack.c.bf16 %v745, %v743
    %v770 = vpack.c.bf16 %v748, %v746
    %v771 = vpack.c.bf16 %v749, %v747
    %v772 = vpack.c.bf16 %v752, %v750
    %v773 = vpack.c.bf16 %v753, %v751
    %v774 = vpack.c.bf16 %v756, %v754
    %v775 = vpack.c.bf16 %v757, %v755
    %v776 = vpack.c.bf16 %v760, %v758
    %v777 = vpack.c.bf16 %v761, %v759
    %v778 = vld [vmem:[%s3] sm:$0xf]
    %s779 = scalar_lea.vmem %s4, 256
    %v780 = vld [vmem:[%s779] sm:$0xff]
    %782 = vset.pattern.permute.xlu0 0
    %783 = vperm.xlu0 %782, %v780
    %v784 = vpop.permute.xlu0 %783
    %786 = vmatprep.subr.bf16.mxu0 %v777
    %787 = vmatpush1.bf16.msra.mxu0 %v776
    %788 = vmatprep.subr.bf16.mxu0 %v775
    %789 = vmatpush1.bf16.msra.mxu0 %v774
    %790 = vmatprep.subr.bf16.mxu0 %v773
    %791 = vmatpush1.bf16.msra.mxu0 %v772
    %792 = vmatprep.subr.bf16.mxu0 %v771
    %793 = vmatpush1.bf16.msra.mxu0 %v770
    %794 = vmatprep.subr.bf16.mxu0 %v769
    %795 = vmatpush1.bf16.msra.mxu0 %v768
    %796 = vmatprep.subr.bf16.mxu0 %v767
    %797 = vmatpush1.bf16.msra.mxu0 %v766
    %798 = vmatprep.subr.bf16.mxu0 %v765
    %799 = vmatpush1.bf16.msra.mxu0 %v764
    %800 = vmatprep.subr.bf16.mxu0 %v763
    %801 = vmatpush1.bf16.msra.mxu0 %v762
    %802 = vmatprep.subr.bf16.mxu0 0
    %803 = vmatpush2.bf16.msra.mxu0 0
    %804 = vmatprep.subr.bf16.mxu0 0
    %805 = vmatpush2.bf16.msra.mxu0 0
    %806 = vmatprep.subr.bf16.mxu0 0
    %807 = vmatpush2.bf16.msra.mxu0 0
    %808 = vmatprep.subr.bf16.mxu0 0
    %809 = vmatpush2.bf16.msra.mxu0 0
    %810 = vmatprep.subr.bf16.mxu0 0
    %811 = vmatpush2.bf16.msra.mxu0 0
    %812 = vmatprep.subr.bf16.mxu0 0
    %813 = vmatpush2.bf16.msra.mxu0 0
    %814 = vmatprep.subr.bf16.mxu0 0
    %815 = vmatpush2.bf16.msra.mxu0 0
    %816 = vmatprep.subr.bf16.mxu0 0
    %817 = vmatpush2.bf16.msra.mxu0 0
    %818 = vmatprep.mubr.bf16.mxu0 0
    %819 = vmatmul.mubr.bf16.gmra.mxu0 %v778
    %v820 = vpop.f32.mrf.mxu0
    %v821 = vadd.f32 %v784, %v820
    %v822 = vpop.f32.mrf.mxu0
    %v823 = vadd.f32 %v784, %v822
    %v824 = vpop.f32.mrf.mxu0
    %v825 = vpop.f32.mrf.mxu0
    %826 = vdwg.mxu0
    %v829 = vrot.slane %v821, 1
    %v830 = vrot.slane %v823, 1
    %v833 = vmin.f32 %v821, %v829
    %v834 = vmin.f32 %v823, %v830
    %v837 = vcombine.low %v833, %v834
    %v839 = vunpack.c.l.s4 1966171168
    %v840 = vunpack.c.0.s8 %v839
    %v841 = vlaneseq
    %v842 = vshrl.u32 %v841, 7
    %v843 = vsub.s32 %v840, %v842
    %v844 = vrot.slane %v837, %v843
    %v846 = vunpack.c.l.s4 1966171168
    %v847 = vunpack.c.0.s8 %v846
    %v848 = vlaneseq
    %v849 = vshrl.u32 %v848, 7
    %v850 = vsub.s32 %v847, %v849
    %v851 = vrot.slane %v844, %v850
    %v853 = vlaneseq
    %vm854 = vcmp.ge.s32.totalorder %v853, 0
    %vm855 = vcmp.lt.s32.totalorder %v853, 256
    %vm856 = vmand %vm854, %vm855
    %857 = vst.msk [vmem:[#allocation2] sm:$0x3] %vm856, %v851
    // Predicated region
    $region22: #{double_critic_forward.1} parent=1 // pred_check
      _
    $region23: #{double_critic_forward.1} parent=1 // pred_check_branch
      %859 = sbr.rel (0) target = $region25
    $region24: #{double_critic_forward.1} parent=1 // pred_region
      %s861 = ssub.s32 32, 32
      %862 = vsyncadd [#allocation3], %s861
      %s864 = sshll.u32 [#allocation2], 4
      %s865 = int_to_ptr.vmem [resolvable:$true] %s864
      %867 = dma.vmem_to_hbm [thread:$0]  %s865, 32, %s5, [#allocation3]
    $region25: #{double_critic_forward.1} parent=1 // pred_fallthru
      _
    // Predicated region
    $region26: #{double_critic_forward.1} parent=1 // pred_check
      _
    $region27: #{double_critic_forward.1} parent=1 // pred_check_branch
      %869 = sbr.rel (0) target = $region29
    $region28: #{double_critic_forward.1} parent=1 // pred_region
      %870 = dma.done [#allocation3], 32
    $region29: #{double_critic_forward.1} parent=1 // pred_fallthru
      _
    %871 = vsyncpa [#allocation3], 1

</llo_original>
